<compile_context>
chip_gen: v7x
topology: tpu7x:2x2x1
jax: 0.10.0
libtpu: 0.0.40
codegen_flags: <defaults>
</compile_context>

<pallas_src>
import functools

import jax
import jax.numpy as jnp
import numpy as np
from jax.experimental import pallas as pl
from jax.experimental.pallas import tpu as pltpu

BN_EPS = 1e-5


# ----------------------------- Pallas kernel ------------------------------------


def channel_att_kernel(
    x_ref,            # (1, Cin, thw)
    w1_ref, t1_ref,   # (Cint, Cin), (Cint, 1)   -- BN scale already folded into w
    w2_ref, t2_ref,   # (Cout, Cint), (Cout, 1)
    feat_ref,         # (1, Cout, thw)
    psum_ref,         # (1, 1, Cout, 1) f32 -- per-chunk spatial sum of feat
    acc_ref,          # scratch (Cout, 1) f32 -- spatial sum accumulator
    *, hw, thw, tiles_per_chunk, needs_mask,
):
    j = pl.program_id(2)

    @pl.when(j == 0)
    def _():
        acc_ref[...] = jnp.zeros_like(acc_ref)

    x = x_ref[0]                                                        # (Cin, thw)

    # Conv1x1 -> BN -> ReLU   (global_att[0:3]);  BN scale folded into w1
    h = jnp.dot(w1_ref[...], x, preferred_element_type=jnp.float32)    # (Cint, thw)
    h = jnp.maximum(h + t1_ref[...], 0.0)

    # Conv1x1 -> BN           (global_att[3:5]);  BN scale folded into w2
    f = jnp.dot(w2_ref[...], h, preferred_element_type=jnp.float32)    # (Cout, thw)
    f = f + t2_ref[...]

    feat_ref[0] = f.astype(feat_ref.dtype)                             # lane-dense store

    if needs_mask:
        # Only the last spatial tile can be partial; zero out padded lanes so the
        # pooled sum stays exact.
        c = pl.program_id(1)
        col0 = (c * tiles_per_chunk + j) * thw
        lane = jax.lax.broadcasted_iota(jnp.int32, (1, thw), 1)
        f = jnp.where((col0 + lane) < hw, f, 0.0)

    # accumulate spatial sum for the global average pool (XLU lane reduce)
    acc_ref[...] += jnp.sum(f, axis=1, keepdims=True)                  # (Cout, 1)

    @pl.when(j == tiles_per_chunk - 1)
    def _():
        psum_ref[0, 0] = acc_ref[...].astype(psum_ref.dtype)


# ----------------------------- wrapper -------------------------------------------


def _round_up(x, m):
    return (x + m - 1) // m * m


def _vmem_capacity_bytes():
    try:
        return int(pltpu.get_tpu_info().vmem_capacity_bytes)
    except Exception:
        return 64 << 20  # safe on every generation (v7x has 64 MiB per TC)


def _pick_spatial_tile(hw, bytes_per_lane, vmem_cap, target_tile_bytes):
    """Lane-tile (multiple of 128) sized from a byte budget, capped by VMEM."""
    hw128 = _round_up(hw, 128)
    budget = min(target_tile_bytes, int(0.40 * vmem_cap))
    thw = max(128, (budget // max(bytes_per_lane, 1)) // 128 * 128)
    return min(thw, hw128)


def channel_att(x, folded_params, *, feat_dtype=None, target_tile_bytes=8 << 20):
    """x: (N, C, H, W). Returns (feat (N,Cout,H,W), atten (N,Cout,1,1))."""
    N, C, H, W = x.shape
    HW = H * W

    (w1f, t1), (w2f, t2), (w3f, t3) = folded_params
    Cint = w1f.shape[0]
    Cout = w2f.shape[0]

    feat_dtype = jnp.dtype(x.dtype) if feat_dtype is None else jnp.dtype(feat_dtype)
    in_item = jnp.dtype(x.dtype).itemsize
    out_item = feat_dtype.itemsize

    vmem_cap = _vmem_capacity_bytes()

    # Double-buffered in + out tile bytes per lane column.
    per_lane = 2 * (C * in_item + Cout * out_item)
    thw = _pick_spatial_tile(HW, per_lane, vmem_cap, target_tile_bytes)

    n_tiles = pl.cdiv(HW, thw)
    # v7x has 2 TensorCores/chip: guarantee a parallel axis with >= 2 blocks when N == 1.
    n_chunks = 1 if N >= 2 else min(2, n_tiles)
    tpc = pl.cdiv(n_tiles, n_chunks)          # spatial tiles per chunk
    HW_pad = n_chunks * tpc * thw
    needs_mask = HW_pad != HW

    # Native layout: NCHW is already (N, C, H*W) -- no transpose, just a reshape.
    x2 = x.reshape(N, C, HW)
    if HW_pad != HW:
        x2 = jnp.pad(x2, ((0, 0), (0, 0), (0, HW_pad - HW)))

    kernel = functools.partial(
        channel_att_kernel, hw=HW, thw=thw, tiles_per_chunk=tpc, needs_mask=needs_mask
    )

    # Accurate resident footprint: double-buffered in/out tiles + weights + scratch +
    # pooled-sum tiles; add ~50% headroom, cap at 75% of physical VMEM (generation-aware).
    w_bytes = (Cint * C + Cint + Cout * Cint + Cout) * 4
    tile_bytes = thw * per_lane
    need = tile_bytes + w_bytes + Cout * 4 + 2 * Cout * 4
    vmem_limit = int(min(max(int(1.5 * need) + (2 << 20), 16 << 20), int(0.75 * vmem_cap)))

    feat2, psum = pl.pallas_call(
        kernel,
        out_shape=(
            jax.ShapeDtypeStruct((N, Cout, HW_pad), feat_dtype),
            jax.ShapeDtypeStruct((N, n_chunks, Cout, 1), jnp.float32),
        ),
        grid_spec=pltpu.PrefetchScalarGridSpec(
            num_scalar_prefetch=0,
            grid=(N, n_chunks, tpc),
            in_specs=[
                pl.BlockSpec((1, C, thw), lambda n, c, j: (n, 0, c * tpc + j)),
                pl.BlockSpec((Cint, C), lambda n, c, j: (0, 0)),
                pl.BlockSpec((Cint, 1), lambda n, c, j: (0, 0)),
                pl.BlockSpec((Cout, Cint), lambda n, c, j: (0, 0)),
                pl.BlockSpec((Cout, 1), lambda n, c, j: (0, 0)),
            ],
            out_specs=[
                pl.BlockSpec((1, Cout, thw), lambda n, c, j: (n, 0, c * tpc + j)),
                pl.BlockSpec((1, 1, Cout, 1), lambda n, c, j: (n, c, 0, 0)),
            ],
            scratch_shapes=[pltpu.VMEM((Cout, 1), jnp.float32)],
        ),
        compiler_params=pltpu.CompilerParams(
            dimension_semantics=("parallel", "parallel", "arbitrary"),
            vmem_limit_bytes=vmem_limit,
        ),
    )(x2, w1f, t1[:, None], w2f, t2[:, None])

    feat = feat2[:, :, :HW].reshape(N, Cout, H, W)

    # Global average pool: combine per-chunk partial sums, divide by true HW.
    mean = jnp.sum(psum[..., 0], axis=1) / HW              # (N, Cout)

    # conv_1x1 (Conv1x1 -> BN -> ReLU) on the pooled vector: tiny, done in the wrapper.
    atten = jax.nn.relu(mean @ w3f.T + t3)                  # (N, Cout)
    atten = atten[:, :, None, None].astype(x.dtype)         # (N, Cout, 1, 1)
    return feat, atten


# ------------------------ deterministic parameter setup ---------------------------


def make_conv_bn(key, cin, cout):
    """Deterministic Conv2d(1x1)+BatchNorm2d params; returns (folded, raw)."""
    w = jax.random.normal(key, (cout, cin), jnp.float32) * 0.2   # (Cout, Cin)
    b = jnp.linspace(-0.1, 0.1, cout, dtype=jnp.float32)
    gamma = 1.0 + 0.05 * jnp.arange(cout, dtype=jnp.float32)
    beta = 0.02 * jnp.arange(cout, dtype=jnp.float32)
    mean = 0.01 * jnp.arange(cout, dtype=jnp.float32)
    var = 1.0 + 0.03 * jnp.arange(cout, dtype=jnp.float32)
    s = gamma / jnp.sqrt(var + BN_EPS)
    wf = w * s[:, None]                      # BN scale folded into the conv weight
    t = s * (b - mean) + beta                # per-channel additive shift
    folded = (wf, t)
    raw = (w, b, gamma, beta, mean, var)
    return folded, raw


def ref_forward(x, raw_params):
    """Pure-JAX reference matching the PyTorch module (BN in eval mode)."""

    def conv1x1(x, w, b):
        return jnp.einsum("nchw,oc->nohw", x, w) + b[None, :, None, None]

    def bn(x, g, be, m, v):
        return (
            g[None, :, None, None]
            * (x - m[None, :, None, None])
            / jnp.sqrt(v + BN_EPS)[None, :, None, None]
            + be[None, :, None, None]
        )

    (w1, b1, g1, be1, m1, v1), (w2, b2, g2, be2, m2, v2), (w3, b3, g3, be3, m3, v3) = (
        raw_params
    )
    h = jax.nn.relu(bn(conv1x1(x, w1, b1), g1, be1, m1, v1))
    feat = bn(conv1x1(h, w2, b2), g2, be2, m2, v2)
    atten = jnp.mean(feat, axis=(2, 3), keepdims=True)
    atten = jax.nn.relu(bn(conv1x1(atten, w3, b3), g3, be3, m3, v3))
    return feat, atten


# ----------------------------------- main ------------------------------------------

if __name__ == "__main__":
    in_channels, out_channels, r = 8, 8, 2
    inter_channels = in_channels // r

    key = jax.random.PRNGKey(0)
    kx, k1, k2, k3, kx2 = jax.random.split(key, 5)

    f1, r1 = make_conv_bn(k1, in_channels, inter_channels)
    f2, r2 = make_conv_bn(k2, inter_channels, out_channels)
    f3, r3 = make_conv_bn(k3, out_channels, out_channels)
    folded = (f1, f2, f3)
    raw = (r1, r2, r3)

    # --- test 1: N=2, spatial divides the tile exactly (fast path, no padding) ---
    N, H, W = 2, 16, 16
    x = jax.random.normal(kx, (N, in_channels, H, W), jnp.float32)

    feat, atten = channel_att(x, folded)
    feat = jax.block_until_ready(feat)
    atten = jax.block_until_ready(atten)

    feat_ref, atten_ref = ref_forward(x, raw)
    np.testing.assert_allclose(np.asarray(feat), np.asarray(feat_ref), rtol=1e-4, atol=1e-4)
    np.testing.assert_allclose(np.asarray(atten), np.asarray(atten_ref), rtol=1e-4, atol=1e-4)

    # --- test 2: N=1, awkward spatial extent -> exercises the parallel spatial-chunk
    #     axis (v7x megacore path), padded last tile and masked pooled sum ---
    N2, H2, W2 = 1, 40, 40
    x2 = jax.random.normal(kx2, (N2, in_channels, H2, W2), jnp.float32)

    feat2, atten2 = channel_att(x2, folded, target_tile_bytes=65536)
    feat2 = jax.block_until_ready(feat2)
    atten2 = jax.block_until_ready(atten2)

    feat2_ref, atten2_ref = ref_forward(x2, raw)
    np.testing.assert_allclose(np.asarray(feat2), np.asarray(feat2_ref), rtol=1e-4, atol=1e-4)
    np.testing.assert_allclose(np.asarray(atten2), np.asarray(atten2_ref), rtol=1e-4, atol=1e-4)

    print("KERNEL_OK")
</pallas_src>

<mosaic_0001>
module attributes {stable_mosaic.version = 11 : i64} {
  func.func @channel_att_kernel(%arg0: i32, %arg1: i32, %arg2: i32, %arg3: memref<1x8x256xf32, #tpu.memory_space<vmem>>, %arg4: memref<4x8xf32, #tpu.memory_space<vmem>>, %arg5: memref<4x1xf32, #tpu.memory_space<vmem>>, %arg6: memref<8x4xf32, #tpu.memory_space<vmem>>, %arg7: memref<8x1xf32, #tpu.memory_space<vmem>>, %arg8: memref<1x8x256xf32, #tpu.memory_space<vmem>>, %arg9: memref<1x1x8x1xf32, #tpu.memory_space<vmem>>, %arg10: memref<8x1xf32, #tpu.memory_space<vmem>>) attributes {dimension_semantics = [#tpu.dimension_semantics<parallel>, #tpu.dimension_semantics<parallel>, #tpu.dimension_semantics<arbitrary>], iteration_bounds = array<i64: 2, 1, 1>, scalar_prefetch = 0 : i64, scratch_operands = 1 : i64, tpu.core_type = #tpu.core_type<tc>, window_params = [{transform_indices = @transform_0, window_bounds = array<i64: 1, 8, 256>}, {pipeline_mode = #tpu.pipeline_mode<synchronous>, transform_indices = @transform_1, window_bounds = array<i64: 4, 8>}, {pipeline_mode = #tpu.pipeline_mode<synchronous>, transform_indices = @transform_2, window_bounds = array<i64: 4, 1>}, {pipeline_mode = #tpu.pipeline_mode<synchronous>, transform_indices = @transform_3, window_bounds = array<i64: 8, 4>}, {pipeline_mode = #tpu.pipeline_mode<synchronous>, transform_indices = @transform_4, window_bounds = array<i64: 8, 1>}, {transform_indices = @transform_5, window_bounds = array<i64: 1, 8, 256>}, {transform_indices = @transform_6, window_bounds = array<i64: 1, 1, 8, 1>}]} {
    %c0_i32 = arith.constant 0 : i32
    %0 = arith.cmpi eq, %arg2, %c0_i32 : i32
    %1 = arith.extui %0 : i1 to i32
    %c0_i32_0 = arith.constant 0 : i32
    %2 = arith.cmpi ne, %1, %c0_i32_0 : i32
    scf.if %2 {
      %cst_23 = arith.constant 0.000000e+00 : f32
      %28 = vector.broadcast %cst_23 : f32 to vector<8x1xf32>
      %c0_24 = arith.constant 0 : index
      %c0_25 = arith.constant 0 : index
      %29 = vector.load %arg10[%c0_24, %c0_25] : memref<8x1xf32, #tpu.memory_space<vmem>>, vector<8x1xf32>
      tpu.vector_store %arg10[%c0_24, %c0_25], %28 {strides = array<i32>} : memref<8x1xf32, #tpu.memory_space<vmem>>, vector<8x1xf32>,
    } else {
    }
    %c0 = arith.constant 0 : index
    %c0_1 = arith.constant 0 : index
    %c0_2 = arith.constant 0 : index
    %3 = vector.load %arg3[%c0, %c0_1, %c0_2] : memref<1x8x256xf32, #tpu.memory_space<vmem>>, vector<1x8x256xf32>
    %4 = vector.shape_cast %3 : vector<1x8x256xf32> to vector<8x256xf32>
    %c0_3 = arith.constant 0 : index
    %c0_4 = arith.constant 0 : index
    %5 = vector.load %arg4[%c0_3, %c0_4] : memref<4x8xf32, #tpu.memory_space<vmem>>, vector<4x8xf32>
    %cst = arith.constant dense<0.000000e+00> : vector<4x256xf32>
    %6 = tpu.matmul %5, %4, %cst {dimension_numbers = #tpu.dot_dimension_numbers<[1], [0], [0], [1], [0, 0, 1, 1], [], []>} : vector<4x8xf32>, vector<8x256xf32>, vector<4x256xf32> -> vector<4x256xf32>
    %c0_5 = arith.constant 0 : index
    %c0_6 = arith.constant 0 : index
    %7 = vector.load %arg5[%c0_5, %c0_6] : memref<4x1xf32, #tpu.memory_space<vmem>>, vector<4x1xf32>
    %8 = vector.broadcast %7 : vector<4x1xf32> to vector<4x256xf32>
    %9 = arith.addf %6, %8 : vector<4x256xf32>
    %cst_7 = arith.constant 0.000000e+00 : f32
    %10 = vector.broadcast %cst_7 : f32 to vector<4x256xf32>
    %11 = arith.maximumf %9, %10 : vector<4x256xf32>
    %c0_8 = arith.constant 0 : index
    %c0_9 = arith.constant 0 : index
    %12 = vector.load %arg6[%c0_8, %c0_9] : memref<8x4xf32, #tpu.memory_space<vmem>>, vector<8x4xf32>
    %cst_10 = arith.constant dense<0.000000e+00> : vector<8x256xf32>
    %13 = tpu.matmul %12, %11, %cst_10 {dimension_numbers = #tpu.dot_dimension_numbers<[1], [0], [0], [1], [0, 0, 1, 1], [], []>} : vector<8x4xf32>, vector<4x256xf32>, vector<8x256xf32> -> vector<8x256xf32>
    %c0_11 = arith.constant 0 : index
    %c0_12 = arith.constant 0 : index
    %14 = vector.load %arg7[%c0_11, %c0_12] : memref<8x1xf32, #tpu.memory_space<vmem>>, vector<8x1xf32>
    %15 = vector.broadcast %14 : vector<8x1xf32> to vector<8x256xf32>
    %16 = arith.addf %13, %15 : vector<8x256xf32>
    %c0_13 = arith.constant 0 : index
    %c0_14 = arith.constant 0 : index
    %c0_15 = arith.constant 0 : index
    %17 = vector.load %arg8[%c0_13, %c0_14, %c0_15] : memref<1x8x256xf32, #tpu.memory_space<vmem>>, vector<1x8x256xf32>
    %18 = vector.shape_cast %17 : vector<1x8x256xf32> to vector<8x256xf32>
    %19 = vector.shape_cast %16 : vector<8x256xf32> to vector<1x8x256xf32>
    tpu.vector_store %arg8[%c0_13, %c0_14, %c0_15], %19 {strides = array<i32>} : memref<1x8x256xf32, #tpu.memory_space<vmem>>, vector<1x8x256xf32>,
    %c0_16 = arith.constant 0 : index
    %c0_17 = arith.constant 0 : index
    %20 = vector.load %arg10[%c0_16, %c0_17] : memref<8x1xf32, #tpu.memory_space<vmem>>, vector<8x1xf32>
    %cst_18 = arith.constant dense<0.000000e+00> : vector<8xf32>
    %21 = vector.multi_reduction <add>, %16, %cst_18 [1] : vector<8x256xf32> to vector<8xf32>
    %22 = vector.shape_cast %21 : vector<8xf32> to vector<8x1xf32>
    %23 = arith.addf %20, %22 : vector<8x1xf32>
    %c0_19 = arith.constant 0 : index
    %c0_20 = arith.constant 0 : index
    %24 = vector.load %arg10[%c0_19, %c0_20] : memref<8x1xf32, #tpu.memory_space<vmem>>, vector<8x1xf32>
    tpu.vector_store %arg10[%c0_19, %c0_20], %23 {strides = array<i32>} : memref<8x1xf32, #tpu.memory_space<vmem>>, vector<8x1xf32>,
    %c0_i32_21 = arith.constant 0 : i32
    %25 = arith.cmpi eq, %arg2, %c0_i32_21 : i32
    %26 = arith.extui %25 : i1 to i32
    %c0_i32_22 = arith.constant 0 : i32
    %27 = arith.cmpi ne, %26, %c0_i32_22 : i32
    scf.if %27 {
      %c0_23 = arith.constant 0 : index
      %c0_24 = arith.constant 0 : index
      %28 = vector.load %arg10[%c0_23, %c0_24] : memref<8x1xf32, #tpu.memory_space<vmem>>, vector<8x1xf32>
      %c0_25 = arith.constant 0 : index
      %c0_26 = arith.constant 0 : index
      %c0_27 = arith.constant 0 : index
      %c0_28 = arith.constant 0 : index
      %29 = vector.load %arg9[%c0_25, %c0_26, %c0_27, %c0_28] : memref<1x1x8x1xf32, #tpu.memory_space<vmem>>, vector<1x1x8x1xf32>
      %30 = vector.shape_cast %29 : vector<1x1x8x1xf32> to vector<8x1xf32>
      %31 = vector.shape_cast %28 : vector<8x1xf32> to vector<1x1x8x1xf32>
      tpu.vector_store %arg9[%c0_25, %c0_26, %c0_27, %c0_28], %31 {strides = array<i32>} : memref<1x1x8x1xf32, #tpu.memory_space<vmem>>, vector<1x1x8x1xf32>,
    } else {
    }
    return
  }
  func.func @transform_0(%arg0: i32, %arg1: i32, %arg2: i32) -> (i32, i32, i32) {
    %c1_i32 = arith.constant 1 : i32
    %0 = arith.muli %arg1, %c1_i32 : i32
    %1 = arith.addi %0, %arg2 : i32
    %c0_i32 = arith.constant 0 : i32
    %c0_i32_0 = arith.constant 0 : i32
    return %arg0, %c0_i32, %1 : i32, i32, i32
  }
  func.func @transform_1(%arg0: i32, %arg1: i32, %arg2: i32) -> (i32, i32) {
    %c0_i32 = arith.constant 0 : i32
    %c0_i32_0 = arith.constant 0 : i32
    %c0_i32_1 = arith.constant 0 : i32
    return %c0_i32, %c0_i32_0 : i32, i32
  }
  func.func @transform_2(%arg0: i32, %arg1: i32, %arg2: i32) -> (i32, i32) {
    %c0_i32 = arith.constant 0 : i32
    %c0_i32_0 = arith.constant 0 : i32
    %c0_i32_1 = arith.constant 0 : i32
    return %c0_i32, %c0_i32_0 : i32, i32
  }
  func.func @transform_3(%arg0: i32, %arg1: i32, %arg2: i32) -> (i32, i32) {
    %c0_i32 = arith.constant 0 : i32
    %c0_i32_0 = arith.constant 0 : i32
    %c0_i32_1 = arith.constant 0 : i32
    return %c0_i32, %c0_i32_0 : i32, i32
  }
  func.func @transform_4(%arg0: i32, %arg1: i32, %arg2: i32) -> (i32, i32) {
    %c0_i32 = arith.constant 0 : i32
    %c0_i32_0 = arith.constant 0 : i32
    %c0_i32_1 = arith.constant 0 : i32
    return %c0_i32, %c0_i32_0 : i32, i32
  }
  func.func @transform_5(%arg0: i32, %arg1: i32, %arg2: i32) -> (i32, i32, i32) {
    %c1_i32 = arith.constant 1 : i32
    %0 = arith.muli %arg1, %c1_i32 : i32
    %1 = arith.addi %0, %arg2 : i32
    %c0_i32 = arith.constant 0 : i32
    %c0_i32_0 = arith.constant 0 : i32
    return %arg0, %c0_i32, %1 : i32, i32, i32
  }
  func.func @transform_6(%arg0: i32, %arg1: i32, %arg2: i32) -> (i32, i32, i32, i32) {
    %c0_i32 = arith.constant 0 : i32
    %c0_i32_0 = arith.constant 0 : i32
    %c0_i32_1 = arith.constant 0 : i32
    return %arg0, %arg1, %c0_i32, %c0_i32_0 : i32, i32, i32, i32
  }
}

</mosaic_0001>

<llo_original>
// kernel: tpu_custom_call.1
$region0: #{tpu_custom_call.1}
  #allocation0 [shape = 'u32[]', space=smem, size = 0x4, offset = 0x4, fixed_abs, tag = 'smem constant byte address 0x4 - core index']
  #allocation1 [shape = 'u32[144,128]{1,0:T(1,128)}', space=vmem, size = 0x12000, scoped, tag = 'internal scratch']
  #allocation2 [shape = 'f32[8,1]{1,0:T(8,128)}', space=vmem, size = 0x1000, scoped, tag = 'scratch operand']
  %s0 = inlined_call_operand.hbm [shape: f32[2,8,256], index: 0, kind: input, shape index: {}]
  %s1 = inlined_call_operand.vmem [shape: f32[4,8], index: 1, kind: input, shape index: {}]
  %s2 = inlined_call_operand.vmem [shape: f32[4,1], index: 2, kind: input, shape index: {}]
  %s3 = inlined_call_operand.vmem [shape: f32[8,4], index: 3, kind: input, shape index: {}]
  %s4 = inlined_call_operand.vmem [shape: f32[8,1], index: 4, kind: input, shape index: {}]
  %s5 = inlined_call_operand.hbm [shape: f32[2,8,256], index: 5, kind: output, shape index: {0}]
  %s6 = inlined_call_operand.vmem [shape: f32[2,1,8,1], index: 6, kind: output, shape index: {1}]
  %7 = xla_tuple %s5, %s6
  %s8 = sld [smem:[#allocation0]]
  $region73: #{tpu_custom_call.1} parent=0
    _
  %s10 = ssub.s32 1, %s8
  %s11 = scalar_select 0, %s10, %s8
  $region1: #{tpu_custom_call.1} parent=0
    #allocation3 [shape = 'u8[16384]{0}', space=vmem, size = 0x4000, scoped, tag = 'input window, operand 0']
    #allocation4 [shape = 's32[2]{0}', space=sflag, size = 0x8, scoped, tag = 'scoped memory for tpu_custom_call.1']
    #allocation5 [shape = 's32[2]{0}', space=sflag, size = 0x8, scoped, tag = 'scoped memory for tpu_custom_call.1']
    #allocation6 [shape = 'u8[16384]{0}', space=vmem, size = 0x4000, scoped, tag = 'output window, operand 0']
    %12 = vsyncpa [#allocation4], 0
    %s13 = scalar_lea.sflag [#allocation4], 1
    %14 = vsyncpa %s13, 0
    %15 = vsyncpa [#allocation5], 0
    %s16 = scalar_lea.sflag [#allocation5], 1
    %17 = vsyncpa %s16, 0
    loop: start=0, step=1, limit=4
    $region2: #{tpu_custom_call.1} parent=1 // loop_pre_header
      _
    $region3: #{tpu_custom_call.1} parent=1 // loop_header
      %s19 = sphi 0, %s23
      %p20 = scmp.ge.s32.totalorder %s19, 4
      %s26 = sphi 0, %s45
      %s27 = sphi 0, %s41
      %s28 = sphi 0, %s37
      %s29 = sphi 0, %s26
      %s30 = sphi 0, %s27
      %s31 = sphi 0, %s28
      %s32 = sphi 0, %s29
      %s33 = sphi 0, %s30
      %s34 = sphi 0, %s31
      %s52 = sphi 0, %s54
      %s55 = sphi 0, %s52
      %s56 = sphi 0, %s55
      %s72 = sphi 0, %s56
      %s76 = sphi 0, %s76
      %s78 = sphi 0, %s76
      %s79 = sphi 0, %s78
      %s93 = sphi 0, %s79
      %s97 = sphi 0, %s97
      %s99 = sphi 0, %s97
      %s100 = sphi 0, %s99
      %s114 = sphi 0, %s100
      %s118 = sphi 0, %s118
      %s120 = sphi 0, %s118
      %s121 = sphi 0, %s120
      %s135 = sphi 0, %s121
      %s139 = sphi 0, %s139
      %s141 = sphi 0, %s139
      %s142 = sphi 0, %s141
      %s156 = sphi 0, %s142
      %s166 = sphi 0, %s168
      %s169 = sphi 0, %s166
      %s170 = sphi 0, %s169
      %s186 = sphi 0, %s170
      %s194 = sphi 0, %s196
      %s197 = sphi 0, %s194
      %s198 = sphi 0, %s197
      %s214 = sphi 0, %s198
    $region4: #{tpu_custom_call.1} parent=1 // loop_header_branch
      %22 = sbr.rel (%p20) target = $region8
    $region5: #{tpu_custom_call.1} parent=1 // loop_body
      %s24 = ssub.s32 %s19, 1
      %s25 = ssub.s32 %s19, 2
      %s35 = sadd.s32 1, %s28
      %p36 = scmp.ge.s32.totalorder %s35, 1
      %s37 = scalar_select %p36, 0, %s35
      %s38 = sadd.s32 1, %s27
      %s39 = scalar_select %p36, %s38, %s27
      %p40 = scmp.ge.s32.totalorder %s39, 1
      %s41 = scalar_select %p40, 0, %s39
      %s42 = sadd.s32 1, %s26
      %s43 = scalar_select %p40, %s42, %s26
      %p44 = scmp.ge.s32.totalorder %s43, 2
      %s45 = scalar_select %p44, 0, %s43
      %s46 = sadd.s32 %s27, %s28
      %s47 = sadd.s32 %s41, %s37
      %s48 = ssub.s32 %s26, %s45
      %s49 = ssub.s32 %s46, %s47
      %s50 = sor.u32 %s48, %s49
      %p51 = scmp.eq.s32.totalorder %s50, 0
      %s53 = sadd.s32 %s52, 1
      %s54 = scalar_select %p51, %s52, %s53
      %p57 = pneg %p51
      %p58 = scmp.eq.s32.totalorder %s19, 1
      %p59 = por %p57, %p58
      %p60 = scmp.ne.s32.totalorder %s52, %s55
      %p61 = scmp.eq.s32.totalorder %s19, 0
      %p62 = por %p60, %p61
      %p63 = scmp.ne.s32.totalorder %s52, %s55
      %p64 = scmp.eq.s32.totalorder %s24, 1
      %p65 = por %p63, %p64
      %p66 = scmp.ne.s32.totalorder %s55, %s56
      %p67 = scmp.eq.s32.totalorder %s24, 0
      %p68 = por %p66, %p67
      %p69 = scmp.ne.s32.totalorder %s55, %s56
      %p70 = scmp.eq.s32.totalorder %s25, 1
      %p71 = por %p69, %p70
      %p73 = scmp.ne.s32.totalorder %s56, %s72
      %p74 = scmp.eq.s32.totalorder %s25, 0
      %p75 = por %p73, %p74
      %s77 = sadd.s32 %s76, 1
      %p80 = scmp.eq.s32.totalorder %s19, 1
      %p81 = scmp.ne.s32.totalorder %s76, %s78
      %p82 = scmp.eq.s32.totalorder %s19, 0
      %p83 = por %p81, %p82
      %p84 = scmp.ne.s32.totalorder %s76, %s78
      %p85 = scmp.eq.s32.totalorder %s24, 1
      %p86 = por %p84, %p85
      %p87 = scmp.ne.s32.totalorder %s78, %s79
      %p88 = scmp.eq.s32.totalorder %s24, 0
      %p89 = por %p87, %p88
      %p90 = scmp.ne.s32.totalorder %s78, %s79
      %p91 = scmp.eq.s32.totalorder %s25, 1
      %p92 = por %p90, %p91
      %p94 = scmp.ne.s32.totalorder %s79, %s93
      %p95 = scmp.eq.s32.totalorder %s25, 0
      %p96 = por %p94, %p95
      %s98 = sadd.s32 %s97, 1
      %p101 = scmp.eq.s32.totalorder %s19, 1
      %p102 = scmp.ne.s32.totalorder %s97, %s99
      %p103 = scmp.eq.s32.totalorder %s19, 0
      %p104 = por %p102, %p103
      %p105 = scmp.ne.s32.totalorder %s97, %s99
      %p106 = scmp.eq.s32.totalorder %s24, 1
      %p107 = por %p105, %p106
      %p108 = scmp.ne.s32.totalorder %s99, %s100
      %p109 = scmp.eq.s32.totalorder %s24, 0
      %p110 = por %p108, %p109
      %p111 = scmp.ne.s32.totalorder %s99, %s100
      %p112 = scmp.eq.s32.totalorder %s25, 1
      %p113 = por %p111, %p112
      %p115 = scmp.ne.s32.totalorder %s100, %s114
      %p116 = scmp.eq.s32.totalorder %s25, 0
      %p117 = por %p115, %p116
      %s119 = sadd.s32 %s118, 1
      %p122 = scmp.eq.s32.totalorder %s19, 1
      %p123 = scmp.ne.s32.totalorder %s118, %s120
      %p124 = scmp.eq.s32.totalorder %s19, 0
      %p125 = por %p123, %p124
      %p126 = scmp.ne.s32.totalorder %s118, %s120
      %p127 = scmp.eq.s32.totalorder %s24, 1
      %p128 = por %p126, %p127
      %p129 = scmp.ne.s32.totalorder %s120, %s121
      %p130 = scmp.eq.s32.totalorder %s24, 0
      %p131 = por %p129, %p130
      %p132 = scmp.ne.s32.totalorder %s120, %s121
      %p133 = scmp.eq.s32.totalorder %s25, 1
      %p134 = por %p132, %p133
      %p136 = scmp.ne.s32.totalorder %s121, %s135
      %p137 = scmp.eq.s32.totalorder %s25, 0
      %p138 = por %p136, %p137
      %s140 = sadd.s32 %s139, 1
      %p143 = scmp.eq.s32.totalorder %s19, 1
      %p144 = scmp.ne.s32.totalorder %s139, %s141
      %p145 = scmp.eq.s32.totalorder %s19, 0
      %p146 = por %p144, %p145
      %p147 = scmp.ne.s32.totalorder %s139, %s141
      %p148 = scmp.eq.s32.totalorder %s24, 1
      %p149 = por %p147, %p148
      %p150 = scmp.ne.s32.totalorder %s141, %s142
      %p151 = scmp.eq.s32.totalorder %s24, 0
      %p152 = por %p150, %p151
      %p153 = scmp.ne.s32.totalorder %s141, %s142
      %p154 = scmp.eq.s32.totalorder %s25, 1
      %p155 = por %p153, %p154
      %p157 = scmp.ne.s32.totalorder %s142, %s156
      %p158 = scmp.eq.s32.totalorder %s25, 0
      %p159 = por %p157, %p158
      %s160 = sadd.s32 %s27, %s28
      %s161 = sadd.s32 %s41, %s37
      %s162 = ssub.s32 %s26, %s45
      %s163 = ssub.s32 %s160, %s161
      %s164 = sor.u32 %s162, %s163
      %p165 = scmp.eq.s32.totalorder %s164, 0
      %s167 = sadd.s32 %s166, 1
      %s168 = scalar_select %p165, %s166, %s167
      %p171 = pneg %p165
      %p172 = scmp.eq.s32.totalorder %s19, 1
      %p173 = por %p171, %p172
      %p174 = scmp.ne.s32.totalorder %s166, %s169
      %p175 = scmp.eq.s32.totalorder %s19, 0
      %p176 = por %p174, %p175
      %p177 = scmp.ne.s32.totalorder %s166, %s169
      %p178 = scmp.eq.s32.totalorder %s24, 1
      %p179 = por %p177, %p178
      %p180 = scmp.ne.s32.totalorder %s169, %s170
      %p181 = scmp.eq.s32.totalorder %s24, 0
      %p182 = por %p180, %p181
      %p183 = scmp.ne.s32.totalorder %s169, %s170
      %p184 = scmp.eq.s32.totalorder %s25, 1
      %p185 = por %p183, %p184
      %p187 = scmp.ne.s32.totalorder %s170, %s186
      %p188 = scmp.eq.s32.totalorder %s25, 0
      %p189 = por %p187, %p188
      %s190 = ssub.s32 %s26, %s45
      %s191 = ssub.s32 %s27, %s41
      %s192 = sor.u32 %s190, %s191
      %p193 = scmp.eq.s32.totalorder %s192, 0
      %s195 = sadd.s32 %s194, 1
      %s196 = scalar_select %p193, %s194, %s195
      %p199 = pneg %p193
      %p200 = scmp.eq.s32.totalorder %s19, 1
      %p201 = por %p199, %p200
      %p202 = scmp.ne.s32.totalorder %s194, %s197
      %p203 = scmp.eq.s32.totalorder %s19, 0
      %p204 = por %p202, %p203
      %p205 = scmp.ne.s32.totalorder %s194, %s197
      %p206 = scmp.eq.s32.totalorder %s24, 1
      %p207 = por %p205, %p206
      %p208 = scmp.ne.s32.totalorder %s197, %s198
      %p209 = scmp.eq.s32.totalorder %s24, 0
      %p210 = por %p208, %p209
      %p211 = scmp.ne.s32.totalorder %s197, %s198
      %p212 = scmp.eq.s32.totalorder %s25, 1
      %p213 = por %p211, %p212
      %p215 = scmp.ne.s32.totalorder %s198, %s214
      %p216 = scmp.eq.s32.totalorder %s25, 0
      %p217 = por %p215, %p216
      %p218 = scmp.le.s32.totalorder 1, %s19
      %p219 = scmp.lt.s32.totalorder %s19, 3
      %p220 = pnand %p218, %p219
      %p221 = pneg %p220
      // Predicated region
      $region9: #{tpu_custom_call.1} parent=5 // pred_check
        _
      $region10: #{tpu_custom_call.1} parent=5 // pred_check_branch
        %223 = sbr.rel (%p220) target = $region12
      $region11: #{tpu_custom_call.1} parent=5 // pred_region
        %s224 = ssub.s32 %s19, 1
        // Predicated region
        $region13: #{tpu_custom_call.1} parent=11 // pred_check
          %p225 = pneg %p89
        $region14: #{tpu_custom_call.1} parent=11 // pred_check_branch
          %227 = sbr.rel (%p225) target = $region16
        $region15: #{tpu_custom_call.1} parent=11 // pred_region
          _
        $region16: #{tpu_custom_call.1} parent=11 // pred_fallthru
          _
        // Predicated region
        $region17: #{tpu_custom_call.1} parent=11 // pred_check
          %p228 = pneg %p110
        $region18: #{tpu_custom_call.1} parent=11 // pred_check_branch
          %230 = sbr.rel (%p228) target = $region20
        $region19: #{tpu_custom_call.1} parent=11 // pred_region
          _
        $region20: #{tpu_custom_call.1} parent=11 // pred_fallthru
          _
        // Predicated region
        $region21: #{tpu_custom_call.1} parent=11 // pred_check
          %p231 = pneg %p131
        $region22: #{tpu_custom_call.1} parent=11 // pred_check_branch
          %233 = sbr.rel (%p231) target = $region24
        $region23: #{tpu_custom_call.1} parent=11 // pred_region
          _
        $region24: #{tpu_custom_call.1} parent=11 // pred_fallthru
          _
        // Predicated region
        $region25: #{tpu_custom_call.1} parent=11 // pred_check
          %p234 = pneg %p152
        $region26: #{tpu_custom_call.1} parent=11 // pred_check_branch
          %236 = sbr.rel (%p234) target = $region28
        $region27: #{tpu_custom_call.1} parent=11 // pred_region
          _
        $region28: #{tpu_custom_call.1} parent=11 // pred_fallthru
          _
      $region12: #{tpu_custom_call.1} parent=5 // pred_fallthru
        _
      %p237 = scmp.lt.s32.totalorder %s19, 2
      // Predicated region
      $region29: #{tpu_custom_call.1} parent=5 // pred_check
        %p238 = pneg %p237
      $region30: #{tpu_custom_call.1} parent=5 // pred_check_branch
        %240 = sbr.rel (%p238) target = $region32
      $region31: #{tpu_custom_call.1} parent=5 // pred_region
        // Predicated region
        $region33: #{tpu_custom_call.1} parent=31 // pred_check
          %p241 = pneg %p62
        $region34: #{tpu_custom_call.1} parent=31 // pred_check_branch
          %243 = sbr.rel (%p241) target = $region36
        $region35: #{tpu_custom_call.1} parent=31 // pred_region
          %s244 = sand.u32 %s52, 1
          %s245 = scalar_lea.sflag [#allocation4], %s244
          %s246 = sand.u32 %s52, 1
          %s247 = smul.addr %s246, 16
          %s248 = scalar_lea.vmem [#allocation3], %s247
          %s249 = sadd.s32 %s27, %s28
          %s250 = smul.u32 2, %s249
          %s252 = ssub.s32 256, 256
          %253 = vsyncadd %s245, %s252
          %s254 = smul.addr %s26, 2
          %s255 = sadd.s32 %s250, %s254
          %s256 = smul.addr %s255, 128
          %s257 = scalar_lea.hbm %s0, %s256
          %s259 = sshll.u32 %s248, 4
          %s260 = int_to_ptr.vmem [resolvable:$true] %s259
          %262 = dma.hbm_to_vmem [thread:$0]  %s257, 256, %s260, %s245
        $region36: #{tpu_custom_call.1} parent=31 // pred_fallthru
          _
      $region32: #{tpu_custom_call.1} parent=5 // pred_fallthru
        _
      %p263 = scmp.le.s32.totalorder 1, %s19
      %p264 = scmp.lt.s32.totalorder %s19, 3
      %p265 = pnand %p263, %p264
      %p266 = pneg %p265
      // Predicated region
      $region37: #{tpu_custom_call.1} parent=5 // pred_check
        _
      $region38: #{tpu_custom_call.1} parent=5 // pred_check_branch
        %268 = sbr.rel (%p265) target = $region40
      $region39: #{tpu_custom_call.1} parent=5 // pred_region
        %s269 = ssub.s32 %s19, 1
        %s270 = sand.u32 %s55, 1
        %s271 = scalar_lea.sflag [#allocation4], %s270
        %s272 = sand.u32 %s55, 1
        %s273 = smul.addr %s272, 16
        %s274 = scalar_lea.vmem [#allocation3], %s273
        // Predicated region
        $region41: #{tpu_custom_call.1} parent=39 // pred_check
          %p275 = pneg %p68
        $region42: #{tpu_custom_call.1} parent=39 // pred_check_branch
          %277 = sbr.rel (%p275) target = $region44
        $region43: #{tpu_custom_call.1} parent=39 // pred_region
          %278 = dma.done %s271, 256
        $region44: #{tpu_custom_call.1} parent=39 // pred_fallthru
          _
        %s279 = sand.u32 %s55, 1
        %s280 = scalar_lea.sflag [#allocation4], %s279
        %s281 = sand.u32 %s55, 1
        %s282 = smul.addr %s281, 16
        %s283 = scalar_lea.vmem [#allocation3], %s282
        %p284 = pneg %p68
        %p285 = pneg %p65
        %p286 = pneg %p89
        %p287 = pneg %p86
        %p288 = pneg %p110
        %p289 = pneg %p107
        %p290 = pneg %p131
        %p291 = pneg %p128
        %p292 = pneg %p152
        %p293 = pneg %p149
        %p294 = pneg %p182
        %p295 = pneg %p179
        %s296 = sand.u32 %s169, 1
        %s297 = scalar_lea.sflag [#allocation5], %s296
        %s298 = sand.u32 %s169, 1
        %s299 = smul.addr %s298, 16
        %s300 = scalar_lea.vmem [#allocation6], %s299
        %p301 = pneg %p210
        %p302 = pneg %p207
        %p303 = scmp.lt.s32.totalorder %s29, 1
        %s304 = scalar_select %p303, %s29, 1
        %p305 = scmp.lt.s32.totalorder %s30, 0
        %s306 = scalar_select %p305, %s30, 0
        %s307 = sadd.s32 %s306, %s304
        %s308 = smul.addr %s307, 8
        %s309 = scalar_lea.vmem %s6, %s308
        %s310 = sadd.s32 %s30, %s31
        %s311 = smul.u32 2, %s310
        %s312 = sadd.s32 %s30, %s31
        %s313 = smul.u32 2, %s312
        %p314 = scmp.lt.s32.totalorder %s29, 1
        %s315 = scalar_select %p314, %s29, 1
        %p316 = scmp.lt.s32.totalorder %s30, 0
        %s317 = scalar_select %p316, %s30, 0
        %s318 = sadd.s32 %s317, %s315
        %s319 = smul.addr %s318, 8
        %s320 = scalar_lea.vmem %s6, %s319
        %p321 = scmp.eq.s32.totalorder %s31, 0
        // Predicated region
        $region45: #{tpu_custom_call.1} parent=39 // pred_check
          %p322 = pneg %p321
        $region46: #{tpu_custom_call.1} parent=39 // pred_check_branch
          %324 = sbr.rel (%p322) target = $region48
        $region47: #{tpu_custom_call.1} parent=39 // pred_region
          %vm325 = vcmask 7168
          %326 = vst.msk [vmem:[#allocation2] sm:$0xff] %vm325, 0.0
        $region48: #{tpu_custom_call.1} parent=39 // pred_fallthru
          _
        %v327 = vld [vmem:[%s274] sm:$0xff]
        %v328 = vld [vmem:[%s274 + $0x8] sm:$0xff]
        %v329 = vld [vmem:[%s1] sm:$0xf]
        %v330 = vld [vmem:[%s2] sm:$0xf]
        %332 = vset.pattern.permute.xlu0 0
        %333 = vperm.xlu0 %332, %v330
        %v334 = vpop.permute.xlu0 %333
        %vm336 = vcmask 64512
        %v338 = vsel %vm336, %v329, 0
        %340 = vmatprep.subr.mxu0 %v328
        %341 = vmatpush1.msra.mxu0 %v327
        %342 = vmatprep.subr.mxu0 0.0
        %343 = vmatpush1.msra.mxu0 0.0
        %344 = vmatprep.subr.mxu0 0.0
        %345 = vmatpush1.msra.mxu0 0.0
        %346 = vmatprep.subr.mxu0 0.0
        %347 = vmatpush1.msra.mxu0 0.0
        %348 = vmatprep.subr.mxu0 0.0
        %349 = vmatpush1.msra.mxu0 0.0
        %350 = vmatprep.subr.mxu0 0.0
        %351 = vmatpush1.msra.mxu0 0.0
        %352 = vmatprep.subr.mxu0 0.0
        %353 = vmatpush1.msra.mxu0 0.0
        %354 = vmatprep.subr.mxu0 0.0
        %355 = vmatpush1.msra.mxu0 0.0
        %356 = vmatprep.subr.mxu0 0.0
        %357 = vmatpush1.msra.mxu0 0.0
        %358 = vmatprep.subr.mxu0 0.0
        %359 = vmatpush1.msra.mxu0 0.0
        %360 = vmatprep.subr.mxu0 0.0
        %361 = vmatpush1.msra.mxu0 0.0
        %362 = vmatprep.subr.mxu0 0.0
        %363 = vmatpush1.msra.mxu0 0.0
        %364 = vmatprep.subr.mxu0 0.0
        %365 = vmatpush1.msra.mxu0 0.0
        %366 = vmatprep.subr.mxu0 0.0
        %367 = vmatpush1.msra.mxu0 0.0
        %368 = vmatprep.subr.mxu0 0.0
        %369 = vmatpush1.msra.mxu0 0.0
        %370 = vmatprep.subr.mxu0 0.0
        %371 = vmatpush1.msra.mxu0 0.0
        %372 = vmatprep.subr.mxu0 0.0
        %373 = vmatpush1.msra.mxu0 0.0
        %374 = vmatprep.subr.mxu0 0.0
        %375 = vmatpush1.msra.mxu0 0.0
        %376 = vmatprep.subr.mxu0 0.0
        %377 = vmatpush1.msra.mxu0 0.0
        %378 = vmatprep.subr.mxu0 0.0
        %379 = vmatpush1.msra.mxu0 0.0
        %380 = vmatprep.subr.mxu0 0.0
        %381 = vmatpush1.msra.mxu0 0.0
        %382 = vmatprep.subr.mxu0 0.0
        %383 = vmatpush1.msra.mxu0 0.0
        %384 = vmatprep.subr.mxu0 0.0
        %385 = vmatpush1.msra.mxu0 0.0
        %386 = vmatprep.subr.mxu0 0.0
        %387 = vmatpush1.msra.mxu0 0.0
        %388 = vmatprep.subr.mxu0 0.0
        %389 = vmatpush1.msra.mxu0 0.0
        %390 = vmatprep.subr.mxu0 0.0
        %391 = vmatpush1.msra.mxu0 0.0
        %392 = vmatprep.subr.mxu0 0.0
        %393 = vmatpush1.msra.mxu0 0.0
        %394 = vmatprep.subr.mxu0 0.0
        %395 = vmatpush1.msra.mxu0 0.0
        %396 = vmatprep.subr.mxu0 0.0
        %397 = vmatpush1.msra.mxu0 0.0
        %398 = vmatprep.subr.mxu0 0.0
        %399 = vmatpush1.msra.mxu0 0.0
        %400 = vmatprep.subr.mxu0 0.0
        %401 = vmatpush1.msra.mxu0 0.0
        %402 = vmatprep.subr.mxu0 0.0
        %403 = vmatpush1.msra.mxu0 0.0
        %404 = vmatprep.mubr.f32.mxu0 0.0
        %405 = vmatmul.mubr.f32.gmra.mrb[0].mxu0 %v338
        %v406 = vpop.f32.mrb[0].mxu0
        %v407 = vadd.f32 %v334, %v406
        %v408 = vpop.f32.mrb[0].mxu0
        %v409 = vadd.f32 %v334, %v408
        %410 = vdwg.mxu0
        %v411 = vmax.f32 %v407, 0.0
        %v412 = vmax.f32 %v409, 0.0
        %v413 = vld [vmem:[%s3] sm:$0xff]
        %v414 = vld [vmem:[%s4] sm:$0xff]
        %416 = vset.pattern.permute.xlu0 0
        %417 = vperm.xlu0 %416, %v414
        %v418 = vpop.permute.xlu0 %417
        %vm420 = vcmask 31744
        %v422 = vsel %vm420, %v413, 0
        %vm424 = vcmask 1043456
        %v426 = vsel %vm424, %v411, 0
        %v429 = vsel %vm424, %v412, 0
        %431 = vmatprep.subr.mxu0 %v429
        %432 = vmatpush1.msra.mxu0 %v426
        %433 = vmatprep.subr.mxu0 0.0
        %434 = vmatpush1.msra.mxu0 0.0
        %435 = vmatprep.subr.mxu0 0.0
        %436 = vmatpush1.msra.mxu0 0.0
        %437 = vmatprep.subr.mxu0 0.0
        %438 = vmatpush1.msra.mxu0 0.0
        %439 = vmatprep.subr.mxu0 0.0
        %440 = vmatpush1.msra.mxu0 0.0
        %441 = vmatprep.subr.mxu0 0.0
        %442 = vmatpush1.msra.mxu0 0.0
        %443 = vmatprep.subr.mxu0 0.0
        %444 = vmatpush1.msra.mxu0 0.0
        %445 = vmatprep.subr.mxu0 0.0
        %446 = vmatpush1.msra.mxu0 0.0
        %447 = vmatprep.subr.mxu0 0.0
        %448 = vmatpush1.msra.mxu0 0.0
        %449 = vmatprep.subr.mxu0 0.0
        %450 = vmatpush1.msra.mxu0 0.0
        %451 = vmatprep.subr.mxu0 0.0
        %452 = vmatpush1.msra.mxu0 0.0
        %453 = vmatprep.subr.mxu0 0.0
        %454 = vmatpush1.msra.mxu0 0.0
        %455 = vmatprep.subr.mxu0 0.0
        %456 = vmatpush1.msra.mxu0 0.0
        %457 = vmatprep.subr.mxu0 0.0
        %458 = vmatpush1.msra.mxu0 0.0
        %459 = vmatprep.subr.mxu0 0.0
        %460 = vmatpush1.msra.mxu0 0.0
        %461 = vmatprep.subr.mxu0 0.0
        %462 = vmatpush1.msra.mxu0 0.0
        %463 = vmatprep.subr.mxu0 0.0
        %464 = vmatpush1.msra.mxu0 0.0
        %465 = vmatprep.subr.mxu0 0.0
        %466 = vmatpush1.msra.mxu0 0.0
        %467 = vmatprep.subr.mxu0 0.0
        %468 = vmatpush1.msra.mxu0 0.0
        %469 = vmatprep.subr.mxu0 0.0
        %470 = vmatpush1.msra.mxu0 0.0
        %471 = vmatprep.subr.mxu0 0.0
        %472 = vmatpush1.msra.mxu0 0.0
        %473 = vmatprep.subr.mxu0 0.0
        %474 = vmatpush1.msra.mxu0 0.0
        %475 = vmatprep.subr.mxu0 0.0
        %476 = vmatpush1.msra.mxu0 0.0
        %477 = vmatprep.subr.mxu0 0.0
        %478 = vmatpush1.msra.mxu0 0.0
        %479 = vmatprep.subr.mxu0 0.0
        %480 = vmatpush1.msra.mxu0 0.0
        %481 = vmatprep.subr.mxu0 0.0
        %482 = vmatpush1.msra.mxu0 0.0
        %483 = vmatprep.subr.mxu0 0.0
        %484 = vmatpush1.msra.mxu0 0.0
        %485 = vmatprep.subr.mxu0 0.0
        %486 = vmatpush1.msra.mxu0 0.0
        %487 = vmatprep.subr.mxu0 0.0
        %488 = vmatpush1.msra.mxu0 0.0
        %489 = vmatprep.subr.mxu0 0.0
        %490 = vmatpush1.msra.mxu0 0.0
        %491 = vmatprep.subr.mxu0 0.0
        %492 = vmatpush1.msra.mxu0 0.0
        %493 = vmatprep.subr.mxu0 0.0
        %494 = vmatpush1.msra.mxu0 0.0
        %495 = vmatprep.mubr.f32.mxu0 0.0
        %496 = vmatmul.mubr.f32.gmra.mrb[0].mxu0 %v422
        %v497 = vpop.f32.mrb[0].mxu0
        %v498 = vadd.f32 %v418, %v497
        %v499 = vpop.f32.mrb[0].mxu0
        %v500 = vadd.f32 %v418, %v499
        %501 = vdwg.mxu0
        %502 = vst [vmem:[%s300] sm:$0xff] %v498
        %503 = vst [vmem:[%s300 + $0x8] sm:$0xff] %v500
        %v504 = vld [vmem:[#allocation2] sm:$0xff]
        %v505 = vadd.f32 %v498, %v500
        %506 = vadd.xlane.f32.xlu0 %v505
        %v507 = vpop.xlane.xlu0 %506
        %v508 = vadd.f32 %v504, %v507
        %vm509 = vcmask 7168
        %510 = vst.msk [vmem:[#allocation2] sm:$0xff] %vm509, %v508
        // Predicated region
        $region49: #{tpu_custom_call.1} parent=39 // pred_check
          %p511 = pneg %p321
        $region50: #{tpu_custom_call.1} parent=39 // pred_check_branch
          %513 = sbr.rel (%p511) target = $region52
        $region51: #{tpu_custom_call.1} parent=39 // pred_region
          %v514 = vld [vmem:[#allocation2] sm:$0xff]
          %515 = vst.msk [vmem:[%s320] sm:$0xff] %vm509, %v514
        $region52: #{tpu_custom_call.1} parent=39 // pred_fallthru
          _
        %s516 = sand.u32 %s169, 1
        %s517 = scalar_lea.sflag [#allocation5], %s516
        %s518 = sand.u32 %s169, 1
        %s519 = smul.addr %s518, 16
        %s520 = scalar_lea.vmem [#allocation6], %s519
        %p521 = scmp.lt.s32.totalorder %s29, 1
        %s522 = scalar_select %p521, %s29, 1
        %p523 = scmp.lt.s32.totalorder %s30, 0
        %s524 = scalar_select %p523, %s30, 0
        %s525 = sadd.s32 %s524, %s522
        %s526 = smul.addr %s525, 8
        %s527 = scalar_lea.vmem %s6, %s526
        // Predicated region
        $region53: #{tpu_custom_call.1} parent=39 // pred_check
          %p528 = pneg %p179
        $region54: #{tpu_custom_call.1} parent=39 // pred_check_branch
          %530 = sbr.rel (%p528) target = $region56
        $region55: #{tpu_custom_call.1} parent=39 // pred_region
          %s531 = sadd.s32 %s30, %s31
          %s532 = smul.u32 2, %s531
          %s534 = ssub.s32 256, 256
          %535 = vsyncadd %s517, %s534
          %s536 = smul.addr %s29, 2
          %s537 = sadd.s32 %s532, %s536
          %s538 = smul.addr %s537, 128
          %s539 = scalar_lea.hbm %s5, %s538
          %s541 = sshll.u32 %s520, 4
          %s542 = int_to_ptr.vmem [resolvable:$true] %s541
          %544 = dma.vmem_to_hbm [thread:$0]  %s542, 256, %s539, %s517
        $region56: #{tpu_custom_call.1} parent=39 // pred_fallthru
          _
        // Predicated region
        $region57: #{tpu_custom_call.1} parent=39 // pred_check
          %p545 = pneg %p207
        $region58: #{tpu_custom_call.1} parent=39 // pred_check_branch
          %547 = sbr.rel (%p545) target = $region60
        $region59: #{tpu_custom_call.1} parent=39 // pred_region
          _
        $region60: #{tpu_custom_call.1} parent=39 // pred_fallthru
          _
      $region40: #{tpu_custom_call.1} parent=5 // pred_fallthru
        _
      %p548 = scmp.le.s32.totalorder 2, %s19
      // Predicated region
      $region61: #{tpu_custom_call.1} parent=5 // pred_check
        %p549 = pneg %p548
      $region62: #{tpu_custom_call.1} parent=5 // pred_check_branch
        %551 = sbr.rel (%p549) target = $region64
      $region63: #{tpu_custom_call.1} parent=5 // pred_region
        %s552 = ssub.s32 %s19, 2
        // Predicated region
        $region65: #{tpu_custom_call.1} parent=63 // pred_check
          %p553 = pneg %p185
        $region66: #{tpu_custom_call.1} parent=63 // pred_check_branch
          %555 = sbr.rel (%p553) target = $region68
        $region67: #{tpu_custom_call.1} parent=63 // pred_region
          %s556 = sand.u32 %s170, 1
          %s557 = scalar_lea.sflag [#allocation5], %s556
          %s558 = sand.u32 %s170, 1
          %s559 = smul.addr %s558, 16
          %s560 = scalar_lea.vmem [#allocation6], %s559
          %561 = dma.done %s557, 256
        $region68: #{tpu_custom_call.1} parent=63 // pred_fallthru
          _
        // Predicated region
        $region69: #{tpu_custom_call.1} parent=63 // pred_check
          %p562 = pneg %p213
        $region70: #{tpu_custom_call.1} parent=63 // pred_check_branch
          %564 = sbr.rel (%p562) target = $region72
        $region71: #{tpu_custom_call.1} parent=63 // pred_region
          %p565 = scmp.lt.s32.totalorder %s32, 1
          %s566 = scalar_select %p565, %s32, 1
          %p567 = scmp.lt.s32.totalorder %s33, 0
          %s568 = scalar_select %p567, %s33, 0
          %s569 = sadd.s32 %s568, %s566
          %s570 = smul.addr %s569, 8
          %s571 = scalar_lea.vmem %s6, %s570
        $region72: #{tpu_custom_call.1} parent=63 // pred_fallthru
          _
      $region64: #{tpu_custom_call.1} parent=5 // pred_fallthru
        _
    $region6: #{tpu_custom_call.1} parent=1 // loop_footer
      %s23 = sadd.s32 1, %s19
    $region7: #{tpu_custom_call.1} parent=1 // loop_footer_branch
      %18 = sbr.rel target = $region3
    $region8: #{tpu_custom_call.1} parent=1 // loop_exit
      _
    %572 = vsyncpa [#allocation4], 1
    %s573 = scalar_lea.sflag [#allocation4], 1
    %574 = vsyncpa %s573, 1
    %575 = vsyncpa [#allocation5], 1
    %s576 = scalar_lea.sflag [#allocation5], 1
    %577 = vsyncpa %s576, 1

</llo_original>
